<compile_context>
chip_gen: v7x
topology: tpu7x:2x2x1
jax: 0.10.0
libtpu: 0.0.40
codegen_flags: <defaults>
</compile_context>

<pallas_src>
import functools

import jax
import jax.numpy as jnp
from jax import lax
from jax.experimental import pallas as pl
from jax.experimental.pallas import tpu as pltpu

BN_EPS = 1e-5
LANE = 128


def _round_up(d, m=LANE):
    return ((d + m - 1) // m) * m


# --------------------------------------------------------------------------
# Fused whole-forward kernel (single pallas_call, no grid, everything in VMEM)
# --------------------------------------------------------------------------
def _fused_mlp_kernel(*refs, offsets, rows, has_mask, model, valid_out):
    if has_mask:
        x_ref, mask_ref, w_ref, o_ref = refs
    else:
        x_ref, w_ref, o_ref = refs
        mask_ref = None

    n_layers = len(offsets)
    h = x_ref[...]                                   # (B, d_in), native width
    inv_n = 1.0 / h.shape[0]

    y = None
    for i in range(n_layers):
        # training-mode dropout right before the final layer (mask pre-scaled
        # by 1/(1-p) on the host; padded lanes of h are 0 so mask pad is moot)
        if mask_ref is not None and i == n_layers - 1:
            h = h * mask_ref[...]

        # static, sublane-aligned block slice of the packed weight slab
        w = w_ref[offsets[i]:offsets[i] + rows[i], :]

        # Linear (no bias: cancelled exactly by BN's mean subtraction)   [MXU]
        y = jnp.dot(h, w, preferred_element_type=jnp.float32)

        # BatchNorm1d training mode: biased batch variance, eps=1e-5,
        # gamma=1 / beta=0 (fresh module).  var = E[y^2] - mean^2 lets both
        # sublane reductions overlap.                                    [XLU]
        mean = jnp.sum(y, axis=0, keepdims=True) * inv_n
        msq = jnp.sum(y * y, axis=0, keepdims=True) * inv_n
        var = msq - mean * mean
        y = (y - mean) * lax.rsqrt(var + BN_EPS)

        if i < n_layers - 1:
            h = jnp.tanh(y)          # padded lanes stay exactly 0 through tanh

    if model == "multiclass":
        lane = lax.broadcasted_iota(jnp.int32, y.shape, 1)
        y = jnp.where(lane < valid_out, y, -1e30)        # mask padded lanes
        m = jnp.max(y, axis=1, keepdims=True)
        y = y - (m + jnp.log(jnp.sum(jnp.exp(y - m), axis=1, keepdims=True)))
    elif model in ("binary", "multilabel"):
        y = jax.nn.sigmoid(y)
    # 'regression': identity

    o_ref[...] = y.astype(o_ref.dtype)       # single lane-dense (B, C) store


# --------------------------------------------------------------------------
# Wrapper: no per-call padding, no per-call slicing, one pallas_call
# --------------------------------------------------------------------------
def supervised_forward(w_slab, meta, x, drop_mask=None, *,
                       model="regression", dropout=True):
    """Fused forward pass.

    w_slab / meta : from make_packed_params (packed once at init).
    x             : (B, dims[0]) f32, native width.
    drop_mask     : (B, C) f32 keep-mask already scaled by 1/(1-p); ignored
                    (and its DMA skipped) when dropout=False.
    Returns the lane-padded (B, C) output; valid columns are [:, :dims[-1]].
    """
    B = x.shape[0]
    C = meta["col_width"]
    has_mask = bool(dropout) and drop_mask is not None

    kern = functools.partial(
        _fused_mlp_kernel,
        offsets=meta["offsets"], rows=meta["rows"],
        has_mask=has_mask, model=model, valid_out=meta["dims"][-1])

    vmem = pl.BlockSpec(memory_space=pltpu.MemorySpace.VMEM)
    args = (x, drop_mask, w_slab) if has_mask else (x, w_slab)
    return pl.pallas_call(
        kern,
        out_shape=jax.ShapeDtypeStruct((B, C), jnp.float32),
        in_specs=[vmem] * len(args),
        out_specs=vmem,
    )(*args)


# --------------------------------------------------------------------------
# One-time parameter construction + packing (hoisted out of the forward path)
# --------------------------------------------------------------------------
def make_packed_params(dims, key):
    """PyTorch-default nn.Linear init.  Only weights are kept for the kernel:
    the Linear bias is cancelled by BN's mean subtraction, and a fresh
    BatchNorm1d has gamma=1 / beta=0.  Weights are packed into ONE (rows, C)
    f32 slab (single parameter DMA).  C = 128-padded widest layer output.
    Block 0 keeps the native d_in rows (x is fed unpadded); later blocks use C
    rows with zeros below the real weight so every matmul is (B, K) @ (K, C)
    with K in {d_in, C} — padded rows/cols are zero, so the math is exact.

    Returns (w_slab, meta, raw_params) — raw_params (with bias) is only used
    by the pure-JAX reference."""
    n_layers = len(dims) - 1
    C = max(_round_up(d) for d in dims[1:])
    rows = (dims[0],) + (C,) * (n_layers - 1)
    offsets, off = [], 0
    for r in rows:
        offsets.append(off)
        off += r

    slab = jnp.zeros((off, C), jnp.float32)
    raw = []
    for i in range(n_layers):
        d_in, d_out = dims[i], dims[i + 1]
        key, kw, kb = jax.random.split(key, 3)
        bound = 1.0 / (d_in ** 0.5)
        w = jax.random.uniform(kw, (d_in, d_out), jnp.float32, -bound, bound)
        b = jax.random.uniform(kb, (1, d_out), jnp.float32, -bound, bound)
        raw.append((w, b))
        slab = slab.at[offsets[i]:offsets[i] + d_in, :d_out].set(w)

    meta = dict(dims=tuple(dims), offsets=tuple(offsets),
                rows=tuple(rows), col_width=C)
    return slab, meta, raw


# --------------------------------------------------------------------------
# Pure-JAX reference (keeps the bias; BN cancels it — validates the drop)
# --------------------------------------------------------------------------
def _ref_bnlinear(x, w, b):
    y = x @ w + b
    mean = jnp.mean(y, axis=0, keepdims=True)
    var = jnp.mean((y - mean) ** 2, axis=0, keepdims=True)
    return (y - mean) / jnp.sqrt(var + BN_EPS)


def _ref_forward(raw_params, x, drop_mask_scaled, model="regression",
                 dropout=True):
    h = x
    for (w, b) in raw_params[:-1]:
        h = jnp.tanh(_ref_bnlinear(h, w, b))
    if dropout:
        h = h * drop_mask_scaled[:, :h.shape[1]]   # mask already holds 1/(1-p)
    y = _ref_bnlinear(h, *raw_params[-1])
    if model == "multiclass":
        y = jax.nn.log_softmax(y, axis=1)
    elif model in ("binary", "multilabel"):
        y = jax.nn.sigmoid(y)
    return y


# --------------------------------------------------------------------------
if __name__ == "__main__":
    # dims = [input_dim, hidden..., output_dim]
    dims = [64, 32, 16, 8]
    batch = 8                       # multiple of 8 (sublane); BN over full batch
    model = "regression"            # PyTorch default
    p_drop = 0.5 if model == "multilabel" else 0.3
    keep = 1.0 - p_drop

    key = jax.random.PRNGKey(0)
    k_params, k_x, k_mask = jax.random.split(key, 3)

    # one-time init + packing (nothing is padded/packed on the forward path)
    w_slab, meta, raw_params = make_packed_params(dims, k_params)

    x = jax.random.normal(k_x, (batch, dims[0]), jnp.float32)
    # deterministic training-mode dropout keep-mask, generated directly at the
    # padded hidden width and PRE-SCALED by 1/(1-p) (== F.dropout in train).
    drop_mask = (jax.random.bernoulli(k_mask, keep, (batch, meta["col_width"]))
                 .astype(jnp.float32) * (1.0 / keep))

    fwd = jax.jit(lambda slab, xx, mm: supervised_forward(
        slab, meta, xx, mm, model=model, dropout=True))
    out_padded = jax.block_until_ready(fwd(w_slab, x, drop_mask))

    d_out = dims[-1]
    assert out_padded.shape == (batch, meta["col_width"])
    out = out_padded[:, :d_out]     # test-only slice; consumers may use the
                                    # padded view directly (review item 7)

    ref = _ref_forward(raw_params, x, drop_mask, model=model, dropout=True)
    assert jnp.allclose(out, ref, atol=1e-4, rtol=1e-4), float(
        jnp.max(jnp.abs(out - ref)))

    print("KERNEL_OK")
</pallas_src>

<mosaic_0001>
module attributes {stable_mosaic.version = 11 : i64} {
  func.func @_fused_mlp_kernel(%arg0: memref<8x64xf32, #tpu.memory_space<vmem>>, %arg1: memref<8x128xf32, #tpu.memory_space<vmem>>, %arg2: memref<320x128xf32, #tpu.memory_space<vmem>>, %arg3: memref<8x128xf32, #tpu.memory_space<vmem>>) attributes {dimension_semantics = [], scalar_prefetch = 0 : i64, scratch_operands = 0 : i64, tpu.core_type = #tpu.core_type<tc>} {
    %c0 = arith.constant 0 : index
    %c0_0 = arith.constant 0 : index
    %0 = vector.load %arg0[%c0, %c0_0] : memref<8x64xf32, #tpu.memory_space<vmem>>, vector<8x64xf32>
    %c0_1 = arith.constant 0 : index
    %c0_2 = arith.constant 0 : index
    %1 = vector.load %arg2[%c0_1, %c0_2] : memref<320x128xf32, #tpu.memory_space<vmem>>, vector<64x128xf32>
    %cst = arith.constant dense<0.000000e+00> : vector<8x128xf32>
    %2 = tpu.matmul %0, %1, %cst {dimension_numbers = #tpu.dot_dimension_numbers<[1], [0], [0], [1], [0, 0, 1, 1], [], []>} : vector<8x64xf32>, vector<64x128xf32>, vector<8x128xf32> -> vector<8x128xf32>
    %cst_3 = arith.constant dense<0.000000e+00> : vector<128xf32>
    %3 = vector.multi_reduction <add>, %2, %cst_3 [0] : vector<8x128xf32> to vector<128xf32>
    %4 = vector.shape_cast %3 : vector<128xf32> to vector<1x128xf32>
    %cst_4 = arith.constant 1.250000e-01 : f32
    %5 = vector.broadcast %cst_4 : f32 to vector<1x128xf32>
    %6 = arith.mulf %4, %5 : vector<1x128xf32>
    %7 = arith.mulf %2, %2 : vector<8x128xf32>
    %cst_5 = arith.constant dense<0.000000e+00> : vector<128xf32>
    %8 = vector.multi_reduction <add>, %7, %cst_5 [0] : vector<8x128xf32> to vector<128xf32>
    %9 = vector.shape_cast %8 : vector<128xf32> to vector<1x128xf32>
    %cst_6 = arith.constant 1.250000e-01 : f32
    %10 = vector.broadcast %cst_6 : f32 to vector<1x128xf32>
    %11 = arith.mulf %9, %10 : vector<1x128xf32>
    %12 = arith.mulf %6, %6 : vector<1x128xf32>
    %13 = arith.subf %11, %12 : vector<1x128xf32>
    %14 = vector.broadcast %6 : vector<1x128xf32> to vector<8x128xf32>
    %15 = arith.subf %2, %14 : vector<8x128xf32>
    %cst_7 = arith.constant 9.99999974E-6 : f32
    %16 = vector.broadcast %cst_7 : f32 to vector<1x128xf32>
    %17 = arith.addf %13, %16 : vector<1x128xf32>
    %18 = math.rsqrt %17 : vector<1x128xf32>
    %19 = vector.broadcast %18 : vector<1x128xf32> to vector<8x128xf32>
    %20 = arith.mulf %15, %19 : vector<8x128xf32>
    %21 = math.tanh %20 : vector<8x128xf32>
    %c64 = arith.constant 64 : index
    %c0_8 = arith.constant 0 : index
    %22 = vector.load %arg2[%c64, %c0_8] : memref<320x128xf32, #tpu.memory_space<vmem>>, vector<128x128xf32>
    %cst_9 = arith.constant dense<0.000000e+00> : vector<8x128xf32>
    %23 = tpu.matmul %21, %22, %cst_9 {dimension_numbers = #tpu.dot_dimension_numbers<[1], [0], [0], [1], [0, 0, 1, 1], [], []>} : vector<8x128xf32>, vector<128x128xf32>, vector<8x128xf32> -> vector<8x128xf32>
    %cst_10 = arith.constant dense<0.000000e+00> : vector<128xf32>
    %24 = vector.multi_reduction <add>, %23, %cst_10 [0] : vector<8x128xf32> to vector<128xf32>
    %25 = vector.shape_cast %24 : vector<128xf32> to vector<1x128xf32>
    %cst_11 = arith.constant 1.250000e-01 : f32
    %26 = vector.broadcast %cst_11 : f32 to vector<1x128xf32>
    %27 = arith.mulf %25, %26 : vector<1x128xf32>
    %28 = arith.mulf %23, %23 : vector<8x128xf32>
    %cst_12 = arith.constant dense<0.000000e+00> : vector<128xf32>
    %29 = vector.multi_reduction <add>, %28, %cst_12 [0] : vector<8x128xf32> to vector<128xf32>
    %30 = vector.shape_cast %29 : vector<128xf32> to vector<1x128xf32>
    %cst_13 = arith.constant 1.250000e-01 : f32
    %31 = vector.broadcast %cst_13 : f32 to vector<1x128xf32>
    %32 = arith.mulf %30, %31 : vector<1x128xf32>
    %33 = arith.mulf %27, %27 : vector<1x128xf32>
    %34 = arith.subf %32, %33 : vector<1x128xf32>
    %35 = vector.broadcast %27 : vector<1x128xf32> to vector<8x128xf32>
    %36 = arith.subf %23, %35 : vector<8x128xf32>
    %cst_14 = arith.constant 9.99999974E-6 : f32
    %37 = vector.broadcast %cst_14 : f32 to vector<1x128xf32>
    %38 = arith.addf %34, %37 : vector<1x128xf32>
    %39 = math.rsqrt %38 : vector<1x128xf32>
    %40 = vector.broadcast %39 : vector<1x128xf32> to vector<8x128xf32>
    %41 = arith.mulf %36, %40 : vector<8x128xf32>
    %42 = math.tanh %41 : vector<8x128xf32>
    %c0_15 = arith.constant 0 : index
    %c0_16 = arith.constant 0 : index
    %43 = vector.load %arg1[%c0_15, %c0_16] : memref<8x128xf32, #tpu.memory_space<vmem>>, vector<8x128xf32>
    %44 = arith.mulf %42, %43 : vector<8x128xf32>
    %c192 = arith.constant 192 : index
    %c0_17 = arith.constant 0 : index
    %45 = vector.load %arg2[%c192, %c0_17] : memref<320x128xf32, #tpu.memory_space<vmem>>, vector<128x128xf32>
    %cst_18 = arith.constant dense<0.000000e+00> : vector<8x128xf32>
    %46 = tpu.matmul %44, %45, %cst_18 {dimension_numbers = #tpu.dot_dimension_numbers<[1], [0], [0], [1], [0, 0, 1, 1], [], []>} : vector<8x128xf32>, vector<128x128xf32>, vector<8x128xf32> -> vector<8x128xf32>
    %cst_19 = arith.constant dense<0.000000e+00> : vector<128xf32>
    %47 = vector.multi_reduction <add>, %46, %cst_19 [0] : vector<8x128xf32> to vector<128xf32>
    %48 = vector.shape_cast %47 : vector<128xf32> to vector<1x128xf32>
    %cst_20 = arith.constant 1.250000e-01 : f32
    %49 = vector.broadcast %cst_20 : f32 to vector<1x128xf32>
    %50 = arith.mulf %48, %49 : vector<1x128xf32>
    %51 = arith.mulf %46, %46 : vector<8x128xf32>
    %cst_21 = arith.constant dense<0.000000e+00> : vector<128xf32>
    %52 = vector.multi_reduction <add>, %51, %cst_21 [0] : vector<8x128xf32> to vector<128xf32>
    %53 = vector.shape_cast %52 : vector<128xf32> to vector<1x128xf32>
    %cst_22 = arith.constant 1.250000e-01 : f32
    %54 = vector.broadcast %cst_22 : f32 to vector<1x128xf32>
    %55 = arith.mulf %53, %54 : vector<1x128xf32>
    %56 = arith.mulf %50, %50 : vector<1x128xf32>
    %57 = arith.subf %55, %56 : vector<1x128xf32>
    %58 = vector.broadcast %50 : vector<1x128xf32> to vector<8x128xf32>
    %59 = arith.subf %46, %58 : vector<8x128xf32>
    %cst_23 = arith.constant 9.99999974E-6 : f32
    %60 = vector.broadcast %cst_23 : f32 to vector<1x128xf32>
    %61 = arith.addf %57, %60 : vector<1x128xf32>
    %62 = math.rsqrt %61 : vector<1x128xf32>
    %63 = vector.broadcast %62 : vector<1x128xf32> to vector<8x128xf32>
    %64 = arith.mulf %59, %63 : vector<8x128xf32>
    %c0_24 = arith.constant 0 : index
    %c0_25 = arith.constant 0 : index
    %65 = vector.load %arg3[%c0_24, %c0_25] : memref<8x128xf32, #tpu.memory_space<vmem>>, vector<8x128xf32>
    tpu.vector_store %arg3[%c0_24, %c0_25], %64 {strides = array<i32>} : memref<8x128xf32, #tpu.memory_space<vmem>>, vector<8x128xf32>,
    return
  }
}

</mosaic_0001>

<llo_original>
// kernel: _lambda_.1
$region0: #{_lambda_.1}
  #allocation0 [shape = 'u32[]', space=smem, size = 0x4, offset = 0x4, fixed_abs, tag = 'smem constant byte address 0x4 - core index']
  #allocation1 [shape = 'u32[144,128]{1,0:T(1,128)}', space=vmem, size = 0x12000, scoped, tag = 'internal scratch']
  %s0 = inlined_call_operand.hbm [shape: f32[8,64], index: 0, kind: input, shape index: {}]
  %s1 = inlined_call_operand.hbm [shape: f32[8,128], index: 1, kind: input, shape index: {}]
  %s2 = inlined_call_operand.hbm [shape: f32[320,128], index: 2, kind: input, shape index: {}]
  %s3 = inlined_call_operand.hbm [shape: f32[8,128], index: 3, kind: output, shape index: {}]
  %s4 = sld [smem:[#allocation0]]
  $region34: #{_lambda_.1} parent=0
    _
  %s6 = ssub.s32 1, %s4
  %s7 = scalar_select 0, %s6, %s4
  $region1: #{_lambda_.1} parent=0
    #allocation2 [shape = 'u8[4096]{0}', space=vmem, size = 0x1000, scoped, tag = 'input window, operand 0, single buffered']
    #allocation3 [shape = 's32[1]{0}', space=sflag, size = 0x4, scoped, tag = 'scoped memory for _lambda_.1']
    #allocation4 [shape = 's32[1]{0}', space=sflag, size = 0x4, scoped, tag = 'scoped memory for _lambda_.1']
    #allocation5 [shape = 'u8[4096]{0}', space=vmem, size = 0x1000, scoped, tag = 'input window, operand 1, single buffered']
    #allocation6 [shape = 's32[1]{0}', space=sflag, size = 0x4, scoped, tag = 'scoped memory for _lambda_.1']
    #allocation7 [shape = 'u8[163840]{0}', space=vmem, size = 0x28000, scoped, tag = 'input window, operand 2, single buffered']
    #allocation8 [shape = 'u8[4096]{0}', space=vmem, size = 0x1000, scoped, tag = 'output window, operand 0, single buffered']
    %8 = vsyncpa [#allocation3], 0
    %9 = vsyncpa [#allocation6], 0
    %10 = vsyncpa [#allocation4], 0
    // Predicated region
    $region2: #{_lambda_.1} parent=1 // pred_check
      _
    $region3: #{_lambda_.1} parent=1 // pred_check_branch
      %12 = sbr.rel (0) target = $region5
    $region4: #{_lambda_.1} parent=1 // pred_region
      %s14 = ssub.s32 128, 128
      %15 = vsyncadd [#allocation3], %s14
      %s17 = sshll.u32 [#allocation2], 4
      %s18 = int_to_ptr.vmem [resolvable:$true] %s17
      %20 = dma.hbm_to_vmem [thread:$0]  %s0, 128, %s18, [#allocation3]
    $region5: #{_lambda_.1} parent=1 // pred_fallthru
      _
    // Predicated region
    $region6: #{_lambda_.1} parent=1 // pred_check
      _
    $region7: #{_lambda_.1} parent=1 // pred_check_branch
      %22 = sbr.rel (0) target = $region9
    $region8: #{_lambda_.1} parent=1 // pred_region
      %s24 = ssub.s32 128, 128
      %25 = vsyncadd [#allocation6], %s24
      %s27 = sshll.u32 [#allocation5], 4
      %s28 = int_to_ptr.vmem [resolvable:$true] %s27
      %30 = dma.hbm_to_vmem [thread:$0]  %s1, 128, %s28, [#allocation6]
    $region9: #{_lambda_.1} parent=1 // pred_fallthru
      _
    // Predicated region
    $region10: #{_lambda_.1} parent=1 // pred_check
      _
    $region11: #{_lambda_.1} parent=1 // pred_check_branch
      %32 = sbr.rel (0) target = $region13
    $region12: #{_lambda_.1} parent=1 // pred_region
      %s34 = ssub.s32 5120, 5120
      %35 = vsyncadd [#allocation6], %s34
      %s36 = sshll.u32 [#allocation7], 4
      %s37 = int_to_ptr.vmem [resolvable:$true] %s36
      %42 = dma.hbm_to_vmem [thread:$0]  %s2, 5120, %s37, [#allocation6], 128, 128, 8
    $region13: #{_lambda_.1} parent=1 // pred_fallthru
      _
    // Predicated region
    $region14: #{_lambda_.1} parent=1 // pred_check
      _
    $region15: #{_lambda_.1} parent=1 // pred_check_branch
      %44 = sbr.rel (0) target = $region17
    $region16: #{_lambda_.1} parent=1 // pred_region
      %45 = dma.done [#allocation3], 128
    $region17: #{_lambda_.1} parent=1 // pred_fallthru
      _
    // Predicated region
    $region18: #{_lambda_.1} parent=1 // pred_check
      _
    $region19: #{_lambda_.1} parent=1 // pred_check_branch
      %47 = sbr.rel (0) target = $region21
    $region20: #{_lambda_.1} parent=1 // pred_region
      %48 = dma.done [#allocation6], 128
    $region21: #{_lambda_.1} parent=1 // pred_fallthru
      _
    // Predicated region
    $region22: #{_lambda_.1} parent=1 // pred_check
      _
    $region23: #{_lambda_.1} parent=1 // pred_check_branch
      %50 = sbr.rel (0) target = $region25
    $region24: #{_lambda_.1} parent=1 // pred_region
      %51 = dma.done [#allocation6], 5120
    $region25: #{_lambda_.1} parent=1 // pred_fallthru
      _
    %v52 = vld [vmem:[#allocation2] sm:$0xff]
    %v53 = vld [vmem:[#allocation7] sm:$0xff]
    %v54 = vld [vmem:[#allocation7 + $0x8] sm:$0xff]
    %v55 = vld [vmem:[#allocation7 + $0x10] sm:$0xff]
    %v56 = vld [vmem:[#allocation7 + $0x18] sm:$0xff]
    %v57 = vld [vmem:[#allocation7 + $0x20] sm:$0xff]
    %v58 = vld [vmem:[#allocation7 + $0x28] sm:$0xff]
    %v59 = vld [vmem:[#allocation7 + $0x30] sm:$0xff]
    %v60 = vld [vmem:[#allocation7 + $0x38] sm:$0xff]
    %vm61 = vcmask 523264
    %v63 = vsel %vm61, %v52, 0
    %65 = vmatprep.subr.mxu0 0.0
    %66 = vmatpush1.msra.mxu0 %v53
    %67 = vmatprep.subr.mxu0 0.0
    %68 = vmatpush1.msra.mxu0 %v54
    %69 = vmatprep.subr.mxu0 0.0
    %70 = vmatpush1.msra.mxu0 %v55
    %71 = vmatprep.subr.mxu0 0.0
    %72 = vmatpush1.msra.mxu0 %v56
    %73 = vmatprep.subr.mxu0 0.0
    %74 = vmatpush1.msra.mxu0 %v57
    %75 = vmatprep.subr.mxu0 0.0
    %76 = vmatpush1.msra.mxu0 %v58
    %77 = vmatprep.subr.mxu0 0.0
    %78 = vmatpush1.msra.mxu0 %v59
    %79 = vmatprep.subr.mxu0 0.0
    %80 = vmatpush1.msra.mxu0 %v60
    %81 = vmatprep.subr.mxu0 0.0
    %82 = vmatpush1.msra.mxu0 0.0
    %83 = vmatprep.subr.mxu0 0.0
    %84 = vmatpush1.msra.mxu0 0.0
    %85 = vmatprep.subr.mxu0 0.0
    %86 = vmatpush1.msra.mxu0 0.0
    %87 = vmatprep.subr.mxu0 0.0
    %88 = vmatpush1.msra.mxu0 0.0
    %89 = vmatprep.subr.mxu0 0.0
    %90 = vmatpush1.msra.mxu0 0.0
    %91 = vmatprep.subr.mxu0 0.0
    %92 = vmatpush1.msra.mxu0 0.0
    %93 = vmatprep.subr.mxu0 0.0
    %94 = vmatpush1.msra.mxu0 0.0
    %95 = vmatprep.subr.mxu0 0.0
    %96 = vmatpush1.msra.mxu0 0.0
    %97 = vmatprep.subr.mxu0 0.0
    %98 = vmatpush1.msra.mxu0 0.0
    %99 = vmatprep.subr.mxu0 0.0
    %100 = vmatpush1.msra.mxu0 0.0
    %101 = vmatprep.subr.mxu0 0.0
    %102 = vmatpush1.msra.mxu0 0.0
    %103 = vmatprep.subr.mxu0 0.0
    %104 = vmatpush1.msra.mxu0 0.0
    %105 = vmatprep.subr.mxu0 0.0
    %106 = vmatpush1.msra.mxu0 0.0
    %107 = vmatprep.subr.mxu0 0.0
    %108 = vmatpush1.msra.mxu0 0.0
    %109 = vmatprep.subr.mxu0 0.0
    %110 = vmatpush1.msra.mxu0 0.0
    %111 = vmatprep.subr.mxu0 0.0
    %112 = vmatpush1.msra.mxu0 0.0
    %113 = vmatprep.subr.mxu0 0.0
    %114 = vmatpush1.msra.mxu0 0.0
    %115 = vmatprep.subr.mxu0 0.0
    %116 = vmatpush1.msra.mxu0 0.0
    %117 = vmatprep.subr.mxu0 0.0
    %118 = vmatpush1.msra.mxu0 0.0
    %119 = vmatprep.subr.mxu0 0.0
    %120 = vmatpush1.msra.mxu0 0.0
    %121 = vmatprep.subr.mxu0 0.0
    %122 = vmatpush1.msra.mxu0 0.0
    %123 = vmatprep.subr.mxu0 0.0
    %124 = vmatpush1.msra.mxu0 0.0
    %125 = vmatprep.subr.mxu0 0.0
    %126 = vmatpush1.msra.mxu0 0.0
    %127 = vmatprep.subr.mxu0 0.0
    %128 = vmatpush1.msra.mxu0 0.0
    %129 = vmatprep.mubr.f32.mxu0 0.0
    %130 = vmatmul.mubr.f32.gmra.mrb[0].mxu0 %v63
    %v131 = vpop.f32.mrb[0].mxu0
    %v132 = vadd.f32 0.0, %v131
    %v133 = vpop.f32.mrb[0].mxu0
    %134 = vdwg.mxu0
    %v135 = vrot.slane %v132, 4
    %v136 = vadd.f32 %v132, %v135
    %v137 = vrot.slane %v136, 2
    %v138 = vadd.f32 %v136, %v137
    %v139 = vrot.slane %v138, 1
    %v140 = vadd.f32 %v138, %v139
    %v141 = vmul.f32 %v140, 0.125
    %v142 = vmul.f32 %v132, %v132
    %v143 = vrot.slane %v142, 4
    %v144 = vadd.f32 %v142, %v143
    %v145 = vrot.slane %v144, 2
    %v146 = vadd.f32 %v144, %v145
    %v147 = vrot.slane %v146, 1
    %v148 = vadd.f32 %v146, %v147
    %v149 = vmul.f32 %v148, 0.125
    %v150 = vmul.f32 %v141, %v141
    %v151 = vsub.f32 %v149, %v150
    %v152 = vsub.f32 %v132, %v141
    %v153 = vadd.f32 %v151, 1e-05
    %v154 = vrsqrt.pop %v153
    %v155 = vmul.f32 %v152, %v154
    %v156 = vtanh.pop %v155
    %v157 = vld [vmem:[#allocation7 + $0x40] sm:$0xff]
    %v158 = vld [vmem:[#allocation7 + $0x48] sm:$0xff]
    %v159 = vld [vmem:[#allocation7 + $0x50] sm:$0xff]
    %v160 = vld [vmem:[#allocation7 + $0x58] sm:$0xff]
    %v161 = vld [vmem:[#allocation7 + $0x60] sm:$0xff]
    %v162 = vld [vmem:[#allocation7 + $0x68] sm:$0xff]
    %v163 = vld [vmem:[#allocation7 + $0x70] sm:$0xff]
    %v164 = vld [vmem:[#allocation7 + $0x78] sm:$0xff]
    %v165 = vld [vmem:[#allocation7 + $0x80] sm:$0xff]
    %v166 = vld [vmem:[#allocation7 + $0x88] sm:$0xff]
    %v167 = vld [vmem:[#allocation7 + $0x90] sm:$0xff]
    %v168 = vld [vmem:[#allocation7 + $0x98] sm:$0xff]
    %v169 = vld [vmem:[#allocation7 + $0xa0] sm:$0xff]
    %v170 = vld [vmem:[#allocation7 + $0xa8] sm:$0xff]
    %v171 = vld [vmem:[#allocation7 + $0xb0] sm:$0xff]
    %v172 = vld [vmem:[#allocation7 + $0xb8] sm:$0xff]
    %173 = vmatprep.subr.mxu0 0.0
    %174 = vmatpush1.msra.mxu0 %v157
    %175 = vmatprep.subr.mxu0 0.0
    %176 = vmatpush1.msra.mxu0 %v158
    %177 = vmatprep.subr.mxu0 0.0
    %178 = vmatpush1.msra.mxu0 %v159
    %179 = vmatprep.subr.mxu0 0.0
    %180 = vmatpush1.msra.mxu0 %v160
    %181 = vmatprep.subr.mxu0 0.0
    %182 = vmatpush1.msra.mxu0 %v161
    %183 = vmatprep.subr.mxu0 0.0
    %184 = vmatpush1.msra.mxu0 %v162
    %185 = vmatprep.subr.mxu0 0.0
    %186 = vmatpush1.msra.mxu0 %v163
    %187 = vmatprep.subr.mxu0 0.0
    %188 = vmatpush1.msra.mxu0 %v164
    %189 = vmatprep.subr.mxu0 0.0
    %190 = vmatpush1.msra.mxu0 %v165
    %191 = vmatprep.subr.mxu0 0.0
    %192 = vmatpush1.msra.mxu0 %v166
    %193 = vmatprep.subr.mxu0 0.0
    %194 = vmatpush1.msra.mxu0 %v167
    %195 = vmatprep.subr.mxu0 0.0
    %196 = vmatpush1.msra.mxu0 %v168
    %197 = vmatprep.subr.mxu0 0.0
    %198 = vmatpush1.msra.mxu0 %v169
    %199 = vmatprep.subr.mxu0 0.0
    %200 = vmatpush1.msra.mxu0 %v170
    %201 = vmatprep.subr.mxu0 0.0
    %202 = vmatpush1.msra.mxu0 %v171
    %203 = vmatprep.subr.mxu0 0.0
    %204 = vmatpush1.msra.mxu0 %v172
    %205 = vmatprep.subr.mxu0 0.0
    %206 = vmatpush1.msra.mxu0 0.0
    %207 = vmatprep.subr.mxu0 0.0
    %208 = vmatpush1.msra.mxu0 0.0
    %209 = vmatprep.subr.mxu0 0.0
    %210 = vmatpush1.msra.mxu0 0.0
    %211 = vmatprep.subr.mxu0 0.0
    %212 = vmatpush1.msra.mxu0 0.0
    %213 = vmatprep.subr.mxu0 0.0
    %214 = vmatpush1.msra.mxu0 0.0
    %215 = vmatprep.subr.mxu0 0.0
    %216 = vmatpush1.msra.mxu0 0.0
    %217 = vmatprep.subr.mxu0 0.0
    %218 = vmatpush1.msra.mxu0 0.0
    %219 = vmatprep.subr.mxu0 0.0
    %220 = vmatpush1.msra.mxu0 0.0
    %221 = vmatprep.subr.mxu0 0.0
    %222 = vmatpush1.msra.mxu0 0.0
    %223 = vmatprep.subr.mxu0 0.0
    %224 = vmatpush1.msra.mxu0 0.0
    %225 = vmatprep.subr.mxu0 0.0
    %226 = vmatpush1.msra.mxu0 0.0
    %227 = vmatprep.subr.mxu0 0.0
    %228 = vmatpush1.msra.mxu0 0.0
    %229 = vmatprep.subr.mxu0 0.0
    %230 = vmatpush1.msra.mxu0 0.0
    %231 = vmatprep.subr.mxu0 0.0
    %232 = vmatpush1.msra.mxu0 0.0
    %233 = vmatprep.subr.mxu0 0.0
    %234 = vmatpush1.msra.mxu0 0.0
    %235 = vmatprep.subr.mxu0 0.0
    %236 = vmatpush1.msra.mxu0 0.0
    %237 = vmatprep.mubr.f32.mxu0 0.0
    %238 = vmatmul.mubr.f32.gmra.mrb[0].mxu0 %v156
    %v239 = vpop.f32.mrb[0].mxu0
    %v240 = vadd.f32 0.0, %v239
    %v241 = vpop.f32.mrb[0].mxu0
    %242 = vdwg.mxu0
    %v243 = vrot.slane %v240, 4
    %v244 = vadd.f32 %v240, %v243
    %v245 = vrot.slane %v244, 2
    %v246 = vadd.f32 %v244, %v245
    %v247 = vrot.slane %v246, 1
    %v248 = vadd.f32 %v246, %v247
    %v249 = vmul.f32 %v248, 0.125
    %v250 = vmul.f32 %v240, %v240
    %v251 = vrot.slane %v250, 4
    %v252 = vadd.f32 %v250, %v251
    %v253 = vrot.slane %v252, 2
    %v254 = vadd.f32 %v252, %v253
    %v255 = vrot.slane %v254, 1
    %v256 = vadd.f32 %v254, %v255
    %v257 = vmul.f32 %v256, 0.125
    %v258 = vmul.f32 %v249, %v249
    %v259 = vsub.f32 %v257, %v258
    %v260 = vsub.f32 %v240, %v249
    %v261 = vadd.f32 %v259, 1e-05
    %v262 = vrsqrt.pop %v261
    %v263 = vmul.f32 %v260, %v262
    %v264 = vtanh.pop %v263
    %v265 = vld [vmem:[#allocation5] sm:$0xff]
    %v266 = vmul.f32 %v264, %v265
    %v267 = vld [vmem:[#allocation7 + $0xc0] sm:$0xff]
    %v268 = vld [vmem:[#allocation7 + $0xc8] sm:$0xff]
    %v269 = vld [vmem:[#allocation7 + $0xd0] sm:$0xff]
    %v270 = vld [vmem:[#allocation7 + $0xd8] sm:$0xff]
    %v271 = vld [vmem:[#allocation7 + $0xe0] sm:$0xff]
    %v272 = vld [vmem:[#allocation7 + $0xe8] sm:$0xff]
    %v273 = vld [vmem:[#allocation7 + $0xf0] sm:$0xff]
    %v274 = vld [vmem:[#allocation7 + $0xf8] sm:$0xff]
    %v275 = vld [vmem:[#allocation7 + $0x100] sm:$0xff]
    %v276 = vld [vmem:[#allocation7 + $0x108] sm:$0xff]
    %v277 = vld [vmem:[#allocation7 + $0x110] sm:$0xff]
    %v278 = vld [vmem:[#allocation7 + $0x118] sm:$0xff]
    %v279 = vld [vmem:[#allocation7 + $0x120] sm:$0xff]
    %v280 = vld [vmem:[#allocation7 + $0x128] sm:$0xff]
    %v281 = vld [vmem:[#allocation7 + $0x130] sm:$0xff]
    %v282 = vld [vmem:[#allocation7 + $0x138] sm:$0xff]
    %283 = vmatprep.subr.mxu0 0.0
    %284 = vmatpush1.msra.mxu0 %v267
    %285 = vmatprep.subr.mxu0 0.0
    %286 = vmatpush1.msra.mxu0 %v268
    %287 = vmatprep.subr.mxu0 0.0
    %288 = vmatpush1.msra.mxu0 %v269
    %289 = vmatprep.subr.mxu0 0.0
    %290 = vmatpush1.msra.mxu0 %v270
    %291 = vmatprep.subr.mxu0 0.0
    %292 = vmatpush1.msra.mxu0 %v271
    %293 = vmatprep.subr.mxu0 0.0
    %294 = vmatpush1.msra.mxu0 %v272
    %295 = vmatprep.subr.mxu0 0.0
    %296 = vmatpush1.msra.mxu0 %v273
    %297 = vmatprep.subr.mxu0 0.0
    %298 = vmatpush1.msra.mxu0 %v274
    %299 = vmatprep.subr.mxu0 0.0
    %300 = vmatpush1.msra.mxu0 %v275
    %301 = vmatprep.subr.mxu0 0.0
    %302 = vmatpush1.msra.mxu0 %v276
    %303 = vmatprep.subr.mxu0 0.0
    %304 = vmatpush1.msra.mxu0 %v277
    %305 = vmatprep.subr.mxu0 0.0
    %306 = vmatpush1.msra.mxu0 %v278
    %307 = vmatprep.subr.mxu0 0.0
    %308 = vmatpush1.msra.mxu0 %v279
    %309 = vmatprep.subr.mxu0 0.0
    %310 = vmatpush1.msra.mxu0 %v280
    %311 = vmatprep.subr.mxu0 0.0
    %312 = vmatpush1.msra.mxu0 %v281
    %313 = vmatprep.subr.mxu0 0.0
    %314 = vmatpush1.msra.mxu0 %v282
    %315 = vmatprep.subr.mxu0 0.0
    %316 = vmatpush1.msra.mxu0 0.0
    %317 = vmatprep.subr.mxu0 0.0
    %318 = vmatpush1.msra.mxu0 0.0
    %319 = vmatprep.subr.mxu0 0.0
    %320 = vmatpush1.msra.mxu0 0.0
    %321 = vmatprep.subr.mxu0 0.0
    %322 = vmatpush1.msra.mxu0 0.0
    %323 = vmatprep.subr.mxu0 0.0
    %324 = vmatpush1.msra.mxu0 0.0
    %325 = vmatprep.subr.mxu0 0.0
    %326 = vmatpush1.msra.mxu0 0.0
    %327 = vmatprep.subr.mxu0 0.0
    %328 = vmatpush1.msra.mxu0 0.0
    %329 = vmatprep.subr.mxu0 0.0
    %330 = vmatpush1.msra.mxu0 0.0
    %331 = vmatprep.subr.mxu0 0.0
    %332 = vmatpush1.msra.mxu0 0.0
    %333 = vmatprep.subr.mxu0 0.0
    %334 = vmatpush1.msra.mxu0 0.0
    %335 = vmatprep.subr.mxu0 0.0
    %336 = vmatpush1.msra.mxu0 0.0
    %337 = vmatprep.subr.mxu0 0.0
    %338 = vmatpush1.msra.mxu0 0.0
    %339 = vmatprep.subr.mxu0 0.0
    %340 = vmatpush1.msra.mxu0 0.0
    %341 = vmatprep.subr.mxu0 0.0
    %342 = vmatpush1.msra.mxu0 0.0
    %343 = vmatprep.subr.mxu0 0.0
    %344 = vmatpush1.msra.mxu0 0.0
    %345 = vmatprep.subr.mxu0 0.0
    %346 = vmatpush1.msra.mxu0 0.0
    %347 = vmatprep.mubr.f32.mxu0 0.0
    %348 = vmatmul.mubr.f32.gmra.mrb[0].mxu0 %v266
    %v349 = vpop.f32.mrb[0].mxu0
    %v350 = vadd.f32 0.0, %v349
    %v351 = vpop.f32.mrb[0].mxu0
    %352 = vdwg.mxu0
    %v353 = vrot.slane %v350, 4
    %v354 = vadd.f32 %v350, %v353
    %v355 = vrot.slane %v354, 2
    %v356 = vadd.f32 %v354, %v355
    %v357 = vrot.slane %v356, 1
    %v358 = vadd.f32 %v356, %v357
    %v359 = vmul.f32 %v358, 0.125
    %v360 = vmul.f32 %v350, %v350
    %v361 = vrot.slane %v360, 4
    %v362 = vadd.f32 %v360, %v361
    %v363 = vrot.slane %v362, 2
    %v364 = vadd.f32 %v362, %v363
    %v365 = vrot.slane %v364, 1
    %v366 = vadd.f32 %v364, %v365
    %v367 = vmul.f32 %v366, 0.125
    %v368 = vmul.f32 %v359, %v359
    %v369 = vsub.f32 %v367, %v368
    %v370 = vsub.f32 %v350, %v359
    %v371 = vadd.f32 %v369, 1e-05
    %v372 = vrsqrt.pop %v371
    %v373 = vmul.f32 %v370, %v372
    %374 = vst [vmem:[#allocation8] sm:$0xff] %v373
    // Predicated region
    $region26: #{_lambda_.1} parent=1 // pred_check
      _
    $region27: #{_lambda_.1} parent=1 // pred_check_branch
      %376 = sbr.rel (0) target = $region29
    $region28: #{_lambda_.1} parent=1 // pred_region
      %s378 = ssub.s32 128, 128
      %379 = vsyncadd [#allocation4], %s378
      %s381 = sshll.u32 [#allocation8], 4
      %s382 = int_to_ptr.vmem [resolvable:$true] %s381
      %384 = dma.vmem_to_hbm [thread:$0]  %s382, 128, %s3, [#allocation4]
    $region29: #{_lambda_.1} parent=1 // pred_fallthru
      _
    // Predicated region
    $region30: #{_lambda_.1} parent=1 // pred_check
      _
    $region31: #{_lambda_.1} parent=1 // pred_check_branch
      %386 = sbr.rel (0) target = $region33
    $region32: #{_lambda_.1} parent=1 // pred_region
      %387 = dma.done [#allocation4], 128
    $region33: #{_lambda_.1} parent=1 // pred_fallthru
      _
    %388 = vsyncpa [#allocation3], 1
    %389 = vsyncpa [#allocation6], 1
    %390 = vsyncpa [#allocation4], 1

</llo_original>
